<compile_context>
chip_gen: v7x
topology: tpu7x:2x2x1
jax: 0.10.0
libtpu: 0.0.40
codegen_flags: <defaults>
</compile_context>

<pallas_src>
import functools

import jax
import jax.numpy as jnp
from jax import lax
from jax.experimental import pallas as pl
from jax.experimental.pallas import tpu as pltpu


def _round_up(x, m):
    return (x + m - 1) // m * m


def _focal_pow(t, gamma):
    """Trace-time specialized (.)**gamma; returns None when gamma == 0."""
    if gamma == 0.0:
        return None                      # factor of 1 -> skip the multiply
    if gamma == 2.0:
        return t * t
    if float(gamma).is_integer() and gamma > 0:
        return lax.integer_pow(t, int(gamma))
    return t ** gamma                    # generic fallback (non-integer gamma)


def _cmfl_kernel(x_ref, idx_ref, out_ref, *,
                 gamma_bimodal, gamma_unimodal, beta, eps):
    # x: [3, C_pad, TN]  (modality, classes on sublanes, rows on lanes)
    x = x_ref[...].astype(jnp.float32)
    _, c_pad, tn = x.shape

    # Fused log-softmax over the class (sublane) axis for all three modalities.
    m = jnp.max(x, axis=1, keepdims=True)       # [3, 1, TN]  cheap sublane reduce
    z = x - m
    e = jnp.exp(z)                              # one EUP pass; reused for pt
    s = jnp.sum(e, axis=1, keepdims=True)       # [3, 1, TN]
    logpt = z - jnp.log(s)

    lp_petct, lp_ct, lp_pet = logpt[0], logpt[1], logpt[2]

    # pt only feeds the focal weights.  Exact reciprocals kept (tolerance).
    pt_ct = e[1] * (1.0 / s[1])
    pt_pet = e[2] * (1.0 / s[2])

    # --- bimodal branch (pt_petct skipped entirely when gamma_bimodal == 0)
    w_b = None
    if gamma_bimodal != 0.0:
        pt_petct = e[0] * (1.0 / s[0])
        w_b = _focal_pow(1.0 - pt_petct, gamma_bimodal)
    mod_petct = lp_petct if w_b is None else w_b * lp_petct

    # --- unimodal branches with cross-modal modulation
    pt_mean = 2.0 * pt_ct * pt_pet / (pt_ct + pt_pet + eps)
    w_ct = _focal_pow(1.0 - pt_mean * pt_ct, gamma_unimodal)
    w_pet = _focal_pow(1.0 - pt_mean * pt_pet, gamma_unimodal)
    mod_ct = lp_ct if w_ct is None else w_ct * lp_ct
    mod_pet = lp_pet if w_pet is None else w_pet * lp_pet

    # Single fused weighted combination + one-hot select + one reduction tree.
    combined = beta * mod_petct + (1.0 - beta) * (mod_ct + mod_pet)  # [C_pad, TN]

    idx = idx_ref[...]                                       # [1, TN] int32
    cls = lax.broadcasted_iota(jnp.int32, (c_pad, tn), 0)    # class id / sublane
    sel = (cls == idx).astype(jnp.float32)                   # padded rows: idx=-1 -> 0

    # Per-row (per-lane) selected value; lane-dense [1, TN] store.
    out_ref[...] = jnp.sum(combined * sel, axis=0, keepdims=True)


def cross_modal_focal_loss(inputs_petct, inputs_ct, inputs_pet, targets,
                           gamma_bimodal=0, gamma_unimodal=2, beta=0.5,
                           eps=1e-8, tile_bytes=1 << 20):
    """Forward of CrossModalFocalLoss (alpha=None) as a Pallas TPU kernel."""
    if inputs_petct.ndim == 1:
        inputs_petct = inputs_petct[None, :]
        inputs_ct = inputs_ct[None, :]
        inputs_pet = inputs_pet[None, :]
        targets = targets[None, :]

    n, c = inputs_petct.shape
    dtype = inputs_petct.dtype

    # class_indices = argmax(targets, dim=1), shipped as lane-dense int32.
    idx = jnp.argmax(targets, axis=1).astype(jnp.int32)

    c_pad = _round_up(c, 8)
    n128 = _round_up(n, 128)

    # Row-tile size: ~tile_bytes of logits per tile, multiple of 128 lanes.
    itemsize = jnp.dtype(dtype).itemsize
    bytes_per_col = 3 * c_pad * itemsize
    tn = max(128, (tile_bytes // bytes_per_col) // 128 * 128)
    tn = min(tn, n128)
    n_pad = _round_up(n, tn)

    # One fused relayout to the lane-dense [3, C_pad, N_pad] slab.
    x = jnp.stack([inputs_petct, inputs_ct, inputs_pet], axis=0)   # [3, N, C]
    x = jnp.transpose(x, (0, 2, 1))                                # [3, C, N]
    if c_pad != c:
        # Padded classes get a huge (finite) negative logit: exp -> 0, so they
        # vanish from the softmax without creating 0 * inf NaNs.
        if jnp.issubdtype(dtype, jnp.floating):
            pad_val = float(jnp.finfo(dtype).min) / 8.0
        else:
            pad_val = -1e30
        x = jnp.pad(x, ((0, 0), (0, c_pad - c), (0, 0)),
                    constant_values=pad_val)
    if n_pad != n:
        x = jnp.pad(x, ((0, 0), (0, 0), (0, n_pad - n)))
        idx = jnp.pad(idx, (0, n_pad - n), constant_values=-1)
    idx = idx.reshape(1, n_pad)

    kernel = functools.partial(
        _cmfl_kernel,
        gamma_bimodal=float(gamma_bimodal),
        gamma_unimodal=float(gamma_unimodal),
        beta=float(beta),
        eps=float(eps),
    )

    per_row = pl.pallas_call(
        kernel,
        out_shape=jax.ShapeDtypeStruct((1, n_pad), jnp.float32),
        grid=(n_pad // tn,),
        in_specs=[
            pl.BlockSpec((3, c_pad, tn), lambda i: (0, 0, i)),
            pl.BlockSpec((1, tn), lambda i: (0, i)),
        ],
        out_specs=pl.BlockSpec((1, tn), lambda i: (0, i)),
        compiler_params=pltpu.CompilerParams(
            dimension_semantics=("parallel",),   # row tiles are independent
            vmem_limit_bytes=32 * 1024 * 1024),  # lifts v5e's 16 MiB default
    )(x, idx)

    # Padded rows contribute exactly 0 (idx = -1 -> empty selection mask).
    return -jnp.sum(per_row) / jnp.float32(n)


def _reference(inputs_petct, inputs_ct, inputs_pet, targets,
               gamma_bimodal=0, gamma_unimodal=2, beta=0.5, eps=1e-8):
    # Pure-JAX reference mirroring the PyTorch forward.
    idx = jnp.argmax(targets, axis=1)
    lsm = lambda v: jax.nn.log_softmax(v, axis=1)
    lp_petct, lp_ct, lp_pet = lsm(inputs_petct), lsm(inputs_ct), lsm(inputs_pet)
    pt_petct, pt_ct, pt_pet = jnp.exp(lp_petct), jnp.exp(lp_ct), jnp.exp(lp_pet)
    lp_petct = (1 - pt_petct) ** gamma_bimodal * lp_petct
    loss_petct = -jnp.mean(jnp.take_along_axis(lp_petct, idx[:, None], axis=1))
    pt_mean = 2 * pt_ct * pt_pet / (pt_ct + pt_pet + eps)
    lp_ct = (1 - pt_mean * pt_ct) ** gamma_unimodal * lp_ct
    loss_ct = -jnp.mean(jnp.take_along_axis(lp_ct, idx[:, None], axis=1))
    lp_pet = (1 - pt_mean * pt_pet) ** gamma_unimodal * lp_pet
    loss_pet = -jnp.mean(jnp.take_along_axis(lp_pet, idx[:, None], axis=1))
    return beta * loss_petct + (1 - beta) * (loss_ct + loss_pet)


if __name__ == "__main__":
    key = jax.random.PRNGKey(0)

    # Case 1: small aligned batch (N=8, C=8) — single tile.
    k1, k2, k3, k4 = jax.random.split(key, 4)
    N, C = 8, 8
    inputs_petct = jax.random.normal(k1, (N, C), dtype=jnp.float32)
    inputs_ct = jax.random.normal(k2, (N, C), dtype=jnp.float32)
    inputs_pet = jax.random.normal(k3, (N, C), dtype=jnp.float32)
    labels = jax.random.randint(k4, (N,), 0, C)
    targets = jax.nn.one_hot(labels, C, dtype=jnp.float32)

    loss = cross_modal_focal_loss(inputs_petct, inputs_ct, inputs_pet, targets)
    loss = jax.block_until_ready(loss)
    ref = _reference(inputs_petct, inputs_ct, inputs_pet, targets)
    assert jnp.allclose(loss, ref, rtol=1e-5, atol=1e-5), (loss, ref)

    # Case 2: non-multiple-of-128 batch (exercises row padding / idx = -1 mask).
    k5, k6, k7, k8 = jax.random.split(jax.random.PRNGKey(1), 4)
    N2, C2 = 10, 8
    a = jax.random.normal(k5, (N2, C2), dtype=jnp.float32)
    b = jax.random.normal(k6, (N2, C2), dtype=jnp.float32)
    d = jax.random.normal(k7, (N2, C2), dtype=jnp.float32)
    lab2 = jax.random.randint(k8, (N2,), 0, C2)
    tgt2 = jax.nn.one_hot(lab2, C2, dtype=jnp.float32)

    loss2 = cross_modal_focal_loss(a, b, d, tgt2)
    loss2 = jax.block_until_ready(loss2)
    ref2 = _reference(a, b, d, tgt2)
    assert jnp.allclose(loss2, ref2, rtol=1e-5, atol=1e-5), (loss2, ref2)

    # Case 3: C not multiple of 8 + multi-tile grid (forced small tile_bytes)
    # and non-default gammas (exercises class padding, integer_pow path, and
    # the parallel multi-step grid).
    k9, k10, k11, k12 = jax.random.split(jax.random.PRNGKey(2), 4)
    N3, C3 = 300, 5
    a3 = jax.random.normal(k9, (N3, C3), dtype=jnp.float32)
    b3 = jax.random.normal(k10, (N3, C3), dtype=jnp.float32)
    d3 = jax.random.normal(k11, (N3, C3), dtype=jnp.float32)
    lab3 = jax.random.randint(k12, (N3,), 0, C3)
    tgt3 = jax.nn.one_hot(lab3, C3, dtype=jnp.float32)

    loss3 = cross_modal_focal_loss(a3, b3, d3, tgt3,
                                   gamma_bimodal=1, gamma_unimodal=3,
                                   beta=0.4, tile_bytes=1 << 10)
    loss3 = jax.block_until_ready(loss3)
    ref3 = _reference(a3, b3, d3, tgt3,
                      gamma_bimodal=1, gamma_unimodal=3, beta=0.4)
    assert jnp.allclose(loss3, ref3, rtol=1e-5, atol=1e-5), (loss3, ref3)

    print("KERNEL_OK")
</pallas_src>

<mosaic_0001>
module attributes {stable_mosaic.version = 11 : i64} {
  func.func @_cmfl_kernel(%arg0: i32, %arg1: memref<3x8x128xf32, #tpu.memory_space<vmem>>, %arg2: memref<1x128xi32, #tpu.memory_space<vmem>>, %arg3: memref<1x128xf32, #tpu.memory_space<vmem>>) attributes {dimension_semantics = [#tpu.dimension_semantics<parallel>], iteration_bounds = array<i64: 1>, scalar_prefetch = 0 : i64, scratch_operands = 0 : i64, tpu.core_type = #tpu.core_type<tc>, window_params = [{transform_indices = @transform_0, window_bounds = array<i64: 3, 8, 128>}, {transform_indices = @transform_1, window_bounds = array<i64: 1, 128>}, {transform_indices = @transform_2, window_bounds = array<i64: 1, 128>}]} {
    %c0 = arith.constant 0 : index
    %c0_0 = arith.constant 0 : index
    %c0_1 = arith.constant 0 : index
    %0 = vector.load %arg1[%c0, %c0_0, %c0_1] : memref<3x8x128xf32, #tpu.memory_space<vmem>>, vector<3x8x128xf32>
    %cst = arith.constant dense<0xFF800000> : vector<3x128xf32>
    %1 = vector.multi_reduction <maximumf>, %0, %cst [1] : vector<3x8x128xf32> to vector<3x128xf32>
    %2 = vector.shape_cast %1 : vector<3x128xf32> to vector<3x1x128xf32>
    %3 = vector.broadcast %2 : vector<3x1x128xf32> to vector<3x8x128xf32>
    %4 = arith.subf %0, %3 : vector<3x8x128xf32>
    %5 = math.exp %4 : vector<3x8x128xf32>
    %cst_2 = arith.constant dense<0.000000e+00> : vector<3x128xf32>
    %6 = vector.multi_reduction <add>, %5, %cst_2 [1] : vector<3x8x128xf32> to vector<3x128xf32>
    %7 = vector.shape_cast %6 : vector<3x128xf32> to vector<3x1x128xf32>
    %8 = math.log %7 : vector<3x1x128xf32>
    %9 = vector.broadcast %8 : vector<3x1x128xf32> to vector<3x8x128xf32>
    %10 = arith.subf %4, %9 : vector<3x8x128xf32>
    %11 = vector.extract_strided_slice %10 {offsets = [0, 0, 0], sizes = [1, 8, 128], strides = [1, 1, 1]} : vector<3x8x128xf32> to vector<1x8x128xf32>
    %12 = vector.shape_cast %11 : vector<1x8x128xf32> to vector<8x128xf32>
    %13 = vector.extract_strided_slice %10 {offsets = [1, 0, 0], sizes = [1, 8, 128], strides = [1, 1, 1]} : vector<3x8x128xf32> to vector<1x8x128xf32>
    %14 = vector.shape_cast %13 : vector<1x8x128xf32> to vector<8x128xf32>
    %15 = vector.extract_strided_slice %10 {offsets = [2, 0, 0], sizes = [1, 8, 128], strides = [1, 1, 1]} : vector<3x8x128xf32> to vector<1x8x128xf32>
    %16 = vector.shape_cast %15 : vector<1x8x128xf32> to vector<8x128xf32>
    %17 = vector.extract_strided_slice %5 {offsets = [1, 0, 0], sizes = [1, 8, 128], strides = [1, 1, 1]} : vector<3x8x128xf32> to vector<1x8x128xf32>
    %18 = vector.shape_cast %17 : vector<1x8x128xf32> to vector<8x128xf32>
    %19 = vector.extract_strided_slice %7 {offsets = [1, 0, 0], sizes = [1, 1, 128], strides = [1, 1, 1]} : vector<3x1x128xf32> to vector<1x1x128xf32>
    %20 = vector.shape_cast %19 : vector<1x1x128xf32> to vector<1x128xf32>
    %cst_3 = arith.constant 1.000000e+00 : f32
    %21 = vector.broadcast %cst_3 : f32 to vector<1x128xf32>
    %22 = arith.divf %21, %20 : vector<1x128xf32>
    %23 = vector.broadcast %22 : vector<1x128xf32> to vector<8x128xf32>
    %24 = arith.mulf %18, %23 : vector<8x128xf32>
    %25 = vector.extract_strided_slice %5 {offsets = [2, 0, 0], sizes = [1, 8, 128], strides = [1, 1, 1]} : vector<3x8x128xf32> to vector<1x8x128xf32>
    %26 = vector.shape_cast %25 : vector<1x8x128xf32> to vector<8x128xf32>
    %27 = vector.extract_strided_slice %7 {offsets = [2, 0, 0], sizes = [1, 1, 128], strides = [1, 1, 1]} : vector<3x1x128xf32> to vector<1x1x128xf32>
    %28 = vector.shape_cast %27 : vector<1x1x128xf32> to vector<1x128xf32>
    %cst_4 = arith.constant 1.000000e+00 : f32
    %29 = vector.broadcast %cst_4 : f32 to vector<1x128xf32>
    %30 = arith.divf %29, %28 : vector<1x128xf32>
    %31 = vector.broadcast %30 : vector<1x128xf32> to vector<8x128xf32>
    %32 = arith.mulf %26, %31 : vector<8x128xf32>
    %cst_5 = arith.constant 2.000000e+00 : f32
    %33 = vector.broadcast %cst_5 : f32 to vector<8x128xf32>
    %34 = arith.mulf %33, %24 : vector<8x128xf32>
    %35 = arith.mulf %34, %32 : vector<8x128xf32>
    %36 = arith.addf %24, %32 : vector<8x128xf32>
    %cst_6 = arith.constant 9.99999993E-9 : f32
    %37 = vector.broadcast %cst_6 : f32 to vector<8x128xf32>
    %38 = arith.addf %36, %37 : vector<8x128xf32>
    %39 = arith.divf %35, %38 : vector<8x128xf32>
    %40 = arith.mulf %39, %24 : vector<8x128xf32>
    %cst_7 = arith.constant 1.000000e+00 : f32
    %41 = vector.broadcast %cst_7 : f32 to vector<8x128xf32>
    %42 = arith.subf %41, %40 : vector<8x128xf32>
    %43 = arith.mulf %42, %42 : vector<8x128xf32>
    %44 = arith.mulf %39, %32 : vector<8x128xf32>
    %cst_8 = arith.constant 1.000000e+00 : f32
    %45 = vector.broadcast %cst_8 : f32 to vector<8x128xf32>
    %46 = arith.subf %45, %44 : vector<8x128xf32>
    %47 = arith.mulf %46, %46 : vector<8x128xf32>
    %48 = arith.mulf %43, %14 : vector<8x128xf32>
    %49 = arith.mulf %47, %16 : vector<8x128xf32>
    %cst_9 = arith.constant 5.000000e-01 : f32
    %50 = vector.broadcast %cst_9 : f32 to vector<8x128xf32>
    %51 = arith.mulf %50, %12 : vector<8x128xf32>
    %52 = arith.addf %48, %49 : vector<8x128xf32>
    %cst_10 = arith.constant 5.000000e-01 : f32
    %53 = vector.broadcast %cst_10 : f32 to vector<8x128xf32>
    %54 = arith.mulf %53, %52 : vector<8x128xf32>
    %55 = arith.addf %51, %54 : vector<8x128xf32>
    %c0_11 = arith.constant 0 : index
    %c0_12 = arith.constant 0 : index
    %56 = vector.load %arg2[%c0_11, %c0_12] : memref<1x128xi32, #tpu.memory_space<vmem>>, vector<1x128xi32>
    %57 = tpu.iota {dimensions = array<i32: 0>} : vector<8x128xi32>
    %58 = vector.broadcast %56 : vector<1x128xi32> to vector<8x128xi32>
    %59 = arith.cmpi eq, %57, %58 : vector<8x128xi32>
    %60 = arith.extui %59 : vector<8x128xi1> to vector<8x128xi32>
    %61 = arith.sitofp %60 : vector<8x128xi32> to vector<8x128xf32>
    %62 = arith.mulf %55, %61 : vector<8x128xf32>
    %cst_13 = arith.constant dense<0.000000e+00> : vector<128xf32>
    %63 = vector.multi_reduction <add>, %62, %cst_13 [0] : vector<8x128xf32> to vector<128xf32>
    %64 = vector.shape_cast %63 : vector<128xf32> to vector<1x128xf32>
    %c0_14 = arith.constant 0 : index
    %c0_15 = arith.constant 0 : index
    %65 = vector.load %arg3[%c0_14, %c0_15] : memref<1x128xf32, #tpu.memory_space<vmem>>, vector<1x128xf32>
    tpu.vector_store %arg3[%c0_14, %c0_15], %64 {strides = array<i32>} : memref<1x128xf32, #tpu.memory_space<vmem>>, vector<1x128xf32>,
    return
  }
  func.func @transform_0(%arg0: i32) -> (i32, i32, i32) {
    %c0_i32 = arith.constant 0 : i32
    %c0_i32_0 = arith.constant 0 : i32
    %c0_i32_1 = arith.constant 0 : i32
    return %c0_i32, %c0_i32_0, %arg0 : i32, i32, i32
  }
  func.func @transform_1(%arg0: i32) -> (i32, i32) {
    %c0_i32 = arith.constant 0 : i32
    %c0_i32_0 = arith.constant 0 : i32
    return %c0_i32, %arg0 : i32, i32
  }
  func.func @transform_2(%arg0: i32) -> (i32, i32) {
    %c0_i32 = arith.constant 0 : i32
    %c0_i32_0 = arith.constant 0 : i32
    return %c0_i32, %arg0 : i32, i32
  }
}

</mosaic_0001>

<llo_original>
// kernel: tpu_custom_call.1
$region0: #{tpu_custom_call.1}
  #allocation0 [shape = 'u32[]', space=smem, size = 0x4, offset = 0x4, fixed_abs, tag = 'smem constant byte address 0x4 - core index']
  #allocation1 [shape = 'u32[144,128]{1,0:T(1,128)}', space=vmem, size = 0x12000, scoped, tag = 'internal scratch']
  %s0 = inlined_call_operand.hbm [shape: f32[3,8,128], index: 0, kind: input, shape index: {}]
  %s1 = inlined_call_operand.vmem [shape: s32[1,128], index: 1, kind: input, shape index: {}]
  %s2 = inlined_call_operand.hbm [shape: f32[1,128], index: 2, kind: output, shape index: {}]
  %s3 = sld [smem:[#allocation0]]
  $region22: #{tpu_custom_call.1} parent=0
    _
  %s5 = ssub.s32 1, %s3
  %s6 = scalar_select 0, %s5, %s3
  $region1: #{tpu_custom_call.1} parent=0
    #allocation2 [shape = 'u8[12288]{0}', space=vmem, size = 0x3000, scoped, tag = 'input window, operand 0, single buffered']
    #allocation3 [shape = 's32[1]{0}', space=sflag, size = 0x4, scoped, tag = 'scoped memory for tpu_custom_call.1']
    #allocation4 [shape = 's32[1]{0}', space=sflag, size = 0x4, scoped, tag = 'scoped memory for tpu_custom_call.1']
    #allocation5 [shape = 'u8[512]{0}', space=vmem, size = 0x400, scoped, tag = 'output window, operand 0, single buffered']
    %7 = vsyncpa [#allocation3], 0
    %8 = vsyncpa [#allocation4], 0
    // Predicated region
    $region2: #{tpu_custom_call.1} parent=1 // pred_check
      _
    $region3: #{tpu_custom_call.1} parent=1 // pred_check_branch
      %10 = sbr.rel (0) target = $region5
    $region4: #{tpu_custom_call.1} parent=1 // pred_region
      %s12 = ssub.s32 384, 384
      %13 = vsyncadd [#allocation3], %s12
      %s14 = sshll.u32 [#allocation2], 4
      %s15 = int_to_ptr.vmem [resolvable:$true] %s14
      %20 = dma.hbm_to_vmem [thread:$0]  %s0, 384, %s15, [#allocation3], 128, 128, 8
    $region5: #{tpu_custom_call.1} parent=1 // pred_fallthru
      _
    // Predicated region
    $region6: #{tpu_custom_call.1} parent=1 // pred_check
      _
    $region7: #{tpu_custom_call.1} parent=1 // pred_check_branch
      %22 = sbr.rel (0) target = $region9
    $region8: #{tpu_custom_call.1} parent=1 // pred_region
      _
    $region9: #{tpu_custom_call.1} parent=1 // pred_fallthru
      _
    // Predicated region
    $region10: #{tpu_custom_call.1} parent=1 // pred_check
      _
    $region11: #{tpu_custom_call.1} parent=1 // pred_check_branch
      %24 = sbr.rel (0) target = $region13
    $region12: #{tpu_custom_call.1} parent=1 // pred_region
      %25 = dma.done [#allocation3], 384
    $region13: #{tpu_custom_call.1} parent=1 // pred_fallthru
      _
    %v26 = vld [vmem:[#allocation2] sm:$0xff]
    %v27 = vld [vmem:[#allocation2 + $0x8] sm:$0xff]
    %v28 = vld [vmem:[#allocation2 + $0x10] sm:$0xff]
    %v29 = vrot.slane %v26, 4
    %v30 = vmax.f32 %v26, %v29
    %v31 = vrot.slane %v30, 2
    %v32 = vmax.f32 %v30, %v31
    %v33 = vrot.slane %v32, 1
    %v34 = vmax.f32 %v32, %v33
    %v35 = vrot.slane %v27, 4
    %v36 = vmax.f32 %v27, %v35
    %v37 = vrot.slane %v36, 2
    %v38 = vmax.f32 %v36, %v37
    %v39 = vrot.slane %v38, 1
    %v40 = vmax.f32 %v38, %v39
    %v41 = vrot.slane %v28, 4
    %v42 = vmax.f32 %v28, %v41
    %v43 = vrot.slane %v42, 2
    %v44 = vmax.f32 %v42, %v43
    %v45 = vrot.slane %v44, 1
    %v46 = vmax.f32 %v44, %v45
    %v47 = vsub.f32 %v26, %v34
    %v48 = vsub.f32 %v27, %v40
    %v49 = vsub.f32 %v28, %v46
    %v50 = vmul.f32 %v47, 1.442695
    %v51 = vpow.pop %v50
    %v52 = vmul.f32 %v48, 1.442695
    %v53 = vpow.pop %v52
    %v54 = vmul.f32 %v49, 1.442695
    %v55 = vpow.pop %v54
    %v56 = vrot.slane %v51, 4
    %v57 = vadd.f32 %v51, %v56
    %v58 = vrot.slane %v57, 2
    %v59 = vadd.f32 %v57, %v58
    %v60 = vrot.slane %v59, 1
    %v61 = vadd.f32 %v59, %v60
    %v62 = vrot.slane %v53, 4
    %v63 = vadd.f32 %v53, %v62
    %v64 = vrot.slane %v63, 2
    %v65 = vadd.f32 %v63, %v64
    %v66 = vrot.slane %v65, 1
    %v67 = vadd.f32 %v65, %v66
    %v68 = vrot.slane %v55, 4
    %v69 = vadd.f32 %v55, %v68
    %v70 = vrot.slane %v69, 2
    %v71 = vadd.f32 %v69, %v70
    %v72 = vrot.slane %v71, 1
    %v73 = vadd.f32 %v71, %v72
    %v74 = vlog2.pop %v61
    %v75 = vmul.f32 %v74, 0.6931472
    %v76 = vlog2.pop %v67
    %v77 = vmul.f32 %v76, 0.6931472
    %v78 = vlog2.pop %v73
    %v79 = vmul.f32 %v78, 0.6931472
    %v80 = vsub.f32 %v47, %v75
    %v81 = vsub.f32 %v48, %v77
    %v82 = vsub.f32 %v49, %v79
    %v83 = vrcp.pop %v67
    %v84 = vmul.f32 1.0, %v83
    %v85 = vmul.f32 %v53, %v84
    %v86 = vrcp.pop %v73
    %v87 = vmul.f32 1.0, %v86
    %v88 = vmul.f32 %v55, %v87
    %v89 = vmul.f32 %v85, 2.0
    %v90 = vmul.f32 %v89, %v88
    %v91 = vadd.f32 %v85, %v88
    %v92 = vadd.f32 %v91, 1e-08
    %v93 = vrcp.pop %v92
    %v94 = vmul.f32 %v90, %v93
    %v95 = vmul.f32 %v94, %v85
    %v96 = vsub.f32 1.0, %v95
    %v97 = vmul.f32 %v96, %v96
    %v98 = vmul.f32 %v94, %v88
    %v99 = vsub.f32 1.0, %v98
    %v100 = vmul.f32 %v99, %v99
    %v101 = vmul.f32 %v97, %v81
    %v102 = vmul.f32 %v100, %v82
    %v103 = vmul.f32 %v80, 0.5
    %v104 = vadd.f32 %v101, %v102
    %v105 = vmul.f32 %v104, 0.5
    %v106 = vadd.f32 %v103, %v105
    %v107 = vld [vmem:[%s1] sm:$0x1]
    %v108 = vlaneseq
    %v109 = vshrl.u32 %v108, 7
    %v110 = vlaneseq
    %v111 = vshrl.u32 %v110, 7
    %v112 = vsub.s32 0, %v111
    %v113 = vrot.slane %v107, %v112
    %vm114 = vcmp.eq.s32.totalorder %v109, %v113
    %v115 = vsel %vm114, 1, 0
    %v116 = vcvt.s32.f32 %v115
    %v117 = vmul.f32 %v106, %v116
    %v118 = vrot.slane %v117, 4
    %v119 = vadd.f32 %v117, %v118
    %v120 = vrot.slane %v119, 2
    %v121 = vadd.f32 %v119, %v120
    %v122 = vrot.slane %v121, 1
    %v123 = vadd.f32 %v121, %v122
    %124 = vst [vmem:[#allocation5] sm:$0x1] %v123
    // Predicated region
    $region14: #{tpu_custom_call.1} parent=1 // pred_check
      _
    $region15: #{tpu_custom_call.1} parent=1 // pred_check_branch
      %126 = sbr.rel (0) target = $region17
    $region16: #{tpu_custom_call.1} parent=1 // pred_region
      %s128 = ssub.s32 16, 16
      %129 = vsyncadd [#allocation4], %s128
      %s131 = sshll.u32 [#allocation5], 4
      %s132 = int_to_ptr.vmem [resolvable:$true] %s131
      %134 = dma.vmem_to_hbm [thread:$0]  %s132, 16, %s2, [#allocation4]
    $region17: #{tpu_custom_call.1} parent=1 // pred_fallthru
      _
    // Predicated region
    $region18: #{tpu_custom_call.1} parent=1 // pred_check
      _
    $region19: #{tpu_custom_call.1} parent=1 // pred_check_branch
      %136 = sbr.rel (0) target = $region21
    $region20: #{tpu_custom_call.1} parent=1 // pred_region
      %137 = dma.done [#allocation4], 16
    $region21: #{tpu_custom_call.1} parent=1 // pred_fallthru
      _
    %138 = vsyncpa [#allocation3], 1
    %139 = vsyncpa [#allocation4], 1

</llo_original>
